<compile_context>
chip_gen: v6e
topology: v6e:2x2x1
jax: 0.10.0
libtpu: 0.0.40
codegen_flags: <defaults>
</compile_context>

<pallas_src>
import functools
import math

import jax
import jax.numpy as jnp
from jax.experimental import pallas as pl
from jax.experimental.pallas import tpu as pltpu


def _flash_attn_kernel(q_ref, k_ref, v_ref, o_ref, m_ref, l_ref, acc_ref,
                       *, seq_len, kv_tile, masked, bf16_exp):
    kv = pl.program_id(3)

    @pl.when(kv == 0)
    def _init():
        m_ref[...] = jnp.full_like(m_ref, -jnp.inf)
        l_ref[...] = jnp.zeros_like(l_ref)
        acc_ref[...] = jnp.zeros_like(acc_ref)

    q = q_ref[0, 0]          # (TQ,  hd) bf16, softmax scale folded into Wq
    k = k_ref[0, 0]          # (TKV, hd) bf16
    v = v_ref[0, 0]          # (TKV, hd) bf16

    # scores = q @ k^T, contracting over head_dim (no explicit transpose).
    s = jax.lax.dot_general(q, k, (((1,), (1,)), ((), ())),
                            preferred_element_type=jnp.float32)   # (TQ, TKV) f32

    # TODO(synk): optional additive `mask` of the PyTorch forward (default None)
    # is not wired through; it would simply be added to `s` here.

    if masked:   # static: only when S was padded up to a KV-tile multiple
        key_pos = kv * kv_tile + jax.lax.broadcasted_iota(jnp.int32, s.shape, 1)
        s = jnp.where(key_pos < seq_len, s, -1e30)

    m_prev = m_ref[...]                                            # (TQ, 1)
    m_new = jnp.maximum(m_prev, jnp.max(s, axis=-1, keepdims=True))
    alpha = jnp.exp(m_prev - m_new)                                # f32

    if bf16_exp:
        # v6e/v7x bf16 EUP path; arguments are <= 0 after max subtraction.
        p = jnp.exp((s - m_new).astype(jnp.bfloat16))              # (TQ, TKV) bf16
        row_sum = jnp.sum(p, axis=-1, keepdims=True, dtype=jnp.float32)
    else:
        # v5e and older: no bf16 VPU/EUP datapath -> keep softmax math in f32.
        p = jnp.exp(s - m_new)
        row_sum = jnp.sum(p, axis=-1, keepdims=True)
        p = p.astype(jnp.bfloat16)

    l_ref[...] = alpha * l_ref[...] + row_sum
    acc_ref[...] = alpha * acc_ref[...] + jnp.dot(
        p, v, preferred_element_type=jnp.float32)                  # (TQ, hd) f32
    m_ref[...] = m_new

    @pl.when(kv == pl.num_programs(3) - 1)
    def _finalize():
        o_ref[0, 0] = (acc_ref[...] *
                       pl.reciprocal(l_ref[...], approx=True)).astype(o_ref.dtype)


def _bf16_exp_supported():
    try:
        kind = jax.devices()[0].device_kind.lower()
    except Exception:
        return False
    # v5e and older have no bf16 VPU/EUP datapath; keep softmax math f32 there.
    return not any(v in kind for v in ("v2", "v3", "v4", "v5"))


def _pick_tile(s):
    for t in (512, 256, 128):
        if s % t == 0:
            return t
    if s <= 512:
        return s       # full-extent block is always a legal tiling
    return 128         # long ragged sequence -> pad to a 128 multiple and mask


def attention_forward(x, wq, wk, wv, wo, *, head, mask=None):
    """x: (B, S, D) float32.  wq/wk/wv/wo: (D, D) PyTorch Linear (out, in) layout."""
    if mask is not None:
        raise NotImplementedError("additive attention mask not wired through")
    B, S, D = x.shape
    assert D % head == 0
    hd = D // head
    scale = 1.0 / math.sqrt(hd)

    # ---- QKV projections: one batched bf16 matmul each (wrapper / XLA) ------
    x2 = x.astype(jnp.bfloat16).reshape(B * S, D)

    def proj(w, s_=None):
        wt = w.T.astype(jnp.float32)
        if s_ is not None:
            wt = wt * s_                       # fold softmax scale into Wq
        y = jnp.dot(x2, wt.astype(jnp.bfloat16),
                    preferred_element_type=jnp.float32)
        return y.astype(jnp.bfloat16).reshape(B, S, head, hd).transpose(0, 2, 1, 3)

    q = proj(wq, scale)                        # (B, H, S, hd) bf16
    k = proj(wk)
    v = proj(wv)

    # ---- tiling / padding ----------------------------------------------------
    tile = _pick_tile(S)
    s_pad = pl.cdiv(S, tile) * tile
    if s_pad != S:
        pad = [(0, 0), (0, 0), (0, s_pad - S), (0, 0)]
        q, k, v = (jnp.pad(a, pad) for a in (q, k, v))
    tq = tkv = tile
    nq, nkv = s_pad // tq, s_pad // tkv

    kernel = functools.partial(
        _flash_attn_kernel, seq_len=S, kv_tile=tkv,
        masked=(s_pad != S), bf16_exp=_bf16_exp_supported())

    # advisory cost / VMEM sizing derived from the actual block sizes
    flops = int(4 * B * head * s_pad * s_pad * hd)                 # QK^T + P@V
    transcendentals = int(B * head * s_pad * s_pad)
    bytes_accessed = int(2 * (B * head * s_pad * hd                # Q read
                              + 2 * B * head * nq * s_pad * hd     # K,V per q-block
                              + B * head * s_pad * hd))            # ctx write
    blk_bytes = 2 * 2 * (tq * hd + 2 * tkv * hd + tq * hd)         # double-buffered bf16
    scratch_bytes = 4 * (tq * hd + 2 * tq)
    temp_bytes = 6 * tq * tkv * 4
    vmem_limit = int(min(64 * 2 ** 20,
                         max(16 * 2 ** 20,
                             4 * (blk_bytes + scratch_bytes + temp_bytes))))

    ctx = pl.pallas_call(
        kernel,
        out_shape=jax.ShapeDtypeStruct((B, head, s_pad, hd), jnp.bfloat16),
        grid_spec=pltpu.PrefetchScalarGridSpec(
            num_scalar_prefetch=0,
            grid=(B, head, nq, nkv),
            in_specs=[
                pl.BlockSpec((1, 1, tq, hd), lambda b, h, qi, kv: (b, h, qi, 0)),
                pl.BlockSpec((1, 1, tkv, hd), lambda b, h, qi, kv: (b, h, kv, 0)),
                pl.BlockSpec((1, 1, tkv, hd), lambda b, h, qi, kv: (b, h, kv, 0)),
            ],
            out_specs=pl.BlockSpec((1, 1, tq, hd), lambda b, h, qi, kv: (b, h, qi, 0)),
            scratch_shapes=[pltpu.VMEM((tq, 1), jnp.float32),    # running max m
                            pltpu.VMEM((tq, 1), jnp.float32),    # running sum l
                            pltpu.VMEM((tq, hd), jnp.float32)],  # ctx accumulator
        ),
        compiler_params=pltpu.CompilerParams(
            dimension_semantics=("parallel", "parallel", "parallel", "arbitrary"),
            vmem_limit_bytes=vmem_limit,
        ),
        cost_estimate=pl.CostEstimate(
            flops=flops, transcendentals=transcendentals,
            bytes_accessed=bytes_accessed),
    )(q, k, v)

    # ---- output projection: single (B*S, D) @ (D, D) bf16 matmul ------------
    ctx = ctx.transpose(0, 2, 1, 3).reshape(B, s_pad, D)[:, :S].reshape(B * S, D)
    out = jnp.dot(ctx, wo.T.astype(jnp.bfloat16),
                  preferred_element_type=jnp.float32)
    return out.reshape(B, S, D).astype(x.dtype)


def _reference_attention(x, wq, wk, wv, wo, *, head):
    """Pure-JAX f32 reference replicating the PyTorch module exactly."""
    B, S, D = x.shape
    hd = D // head
    xq = (x @ wq.T).reshape(B, S, head, hd).transpose(0, 2, 1, 3)
    xk = (x @ wk.T).reshape(B, S, head, hd).transpose(0, 2, 1, 3)
    xv = (x @ wv.T).reshape(B, S, head, hd).transpose(0, 2, 1, 3)
    score = jnp.einsum("bhqd,bhkd->bhqk", xq, xk) / math.sqrt(hd)
    attn = jax.nn.softmax(score, axis=-1)
    out = jnp.einsum("bhqk,bhkd->bhqd", attn, xv)
    out = out.transpose(0, 2, 1, 3).reshape(B, S, D)
    return out @ wo.T


if __name__ == "__main__":
    B, S, D, H = 2, 8, 32, 4

    key = jax.random.PRNGKey(0)
    kx, kq, kk, kv, ko = jax.random.split(key, 5)

    x = jax.random.normal(kx, (B, S, D), dtype=jnp.float32)
    # nn.Linear(dim, dim, bias=False) weights: shape (out=dim, in=dim)
    bound = 1.0 / math.sqrt(D)
    wq = jax.random.uniform(kq, (D, D), jnp.float32, -bound, bound)
    wk = jax.random.uniform(kk, (D, D), jnp.float32, -bound, bound)
    wv = jax.random.uniform(kv, (D, D), jnp.float32, -bound, bound)
    wo = jax.random.uniform(ko, (D, D), jnp.float32, -bound, bound)

    out = attention_forward(x, wq, wk, wv, wo, head=H)
    out = jax.block_until_ready(out)

    ref = _reference_attention(x, wq, wk, wv, wo, head=H)
    assert out.shape == (B, S, D)
    # bf16 MXU operands / bf16 exp (f32 accumulation) -> loosened tolerance.
    max_err = float(jnp.max(jnp.abs(out - ref)))
    assert jnp.allclose(out, ref, atol=5e-2, rtol=5e-2), f"max abs err = {max_err}"

    print("KERNEL_OK")
</pallas_src>

<mosaic_0001>
module attributes {stable_mosaic.version = 11 : i64} {
  func.func @_flash_attn_kernel(%arg0: i32, %arg1: i32, %arg2: i32, %arg3: i32, %arg4: memref<1x1x8x8xbf16, #tpu.memory_space<vmem>>, %arg5: memref<1x1x8x8xbf16, #tpu.memory_space<vmem>>, %arg6: memref<1x1x8x8xbf16, #tpu.memory_space<vmem>>, %arg7: memref<1x1x8x8xbf16, #tpu.memory_space<vmem>>, %arg8: memref<8x1xf32, #tpu.memory_space<vmem>>, %arg9: memref<8x1xf32, #tpu.memory_space<vmem>>, %arg10: memref<8x8xf32, #tpu.memory_space<vmem>>) attributes {dimension_semantics = [#tpu.dimension_semantics<parallel>, #tpu.dimension_semantics<parallel>, #tpu.dimension_semantics<parallel>, #tpu.dimension_semantics<arbitrary>], iteration_bounds = array<i64: 2, 4, 1, 1>, scalar_prefetch = 0 : i64, scratch_operands = 3 : i64, tpu.core_type = #tpu.core_type<tc>, window_params = [{transform_indices = @transform_0, window_bounds = array<i64: 1, 1, 8, 8>}, {transform_indices = @transform_1, window_bounds = array<i64: 1, 1, 8, 8>}, {transform_indices = @transform_2, window_bounds = array<i64: 1, 1, 8, 8>}, {transform_indices = @transform_3, window_bounds = array<i64: 1, 1, 8, 8>}]} {
    %c0_i32 = arith.constant 0 : i32
    %0 = arith.cmpi eq, %arg3, %c0_i32 : i32
    %1 = arith.extui %0 : i1 to i32
    %c0_i32_0 = arith.constant 0 : i32
    %2 = arith.cmpi ne, %1, %c0_i32_0 : i32
    scf.if %2 {
      %cst_29 = arith.constant 0xFF800000 : f32
      %37 = vector.broadcast %cst_29 : f32 to vector<8x1xf32>
      %c0_30 = arith.constant 0 : index
      %c0_31 = arith.constant 0 : index
      %38 = vector.load %arg8[%c0_30, %c0_31] : memref<8x1xf32, #tpu.memory_space<vmem>>, vector<8x1xf32>
      tpu.vector_store %arg8[%c0_30, %c0_31], %37 {strides = array<i32>} : memref<8x1xf32, #tpu.memory_space<vmem>>, vector<8x1xf32>,
      %cst_32 = arith.constant 0.000000e+00 : f32
      %39 = vector.broadcast %cst_32 : f32 to vector<8x1xf32>
      %c0_33 = arith.constant 0 : index
      %c0_34 = arith.constant 0 : index
      %40 = vector.load %arg9[%c0_33, %c0_34] : memref<8x1xf32, #tpu.memory_space<vmem>>, vector<8x1xf32>
      tpu.vector_store %arg9[%c0_33, %c0_34], %39 {strides = array<i32>} : memref<8x1xf32, #tpu.memory_space<vmem>>, vector<8x1xf32>,
      %cst_35 = arith.constant 0.000000e+00 : f32
      %41 = vector.broadcast %cst_35 : f32 to vector<8x8xf32>
      %c0_36 = arith.constant 0 : index
      %c0_37 = arith.constant 0 : index
      %42 = vector.load %arg10[%c0_36, %c0_37] : memref<8x8xf32, #tpu.memory_space<vmem>>, vector<8x8xf32>
      tpu.vector_store %arg10[%c0_36, %c0_37], %41 {strides = array<i32>} : memref<8x8xf32, #tpu.memory_space<vmem>>, vector<8x8xf32>,
    } else {
    }
    %c0 = arith.constant 0 : index
    %c0_1 = arith.constant 0 : index
    %c0_2 = arith.constant 0 : index
    %c0_3 = arith.constant 0 : index
    %3 = vector.load %arg4[%c0, %c0_1, %c0_2, %c0_3] : memref<1x1x8x8xbf16, #tpu.memory_space<vmem>>, vector<1x1x8x8xbf16>
    %4 = vector.shape_cast %3 : vector<1x1x8x8xbf16> to vector<8x8xbf16>
    %c0_4 = arith.constant 0 : index
    %c0_5 = arith.constant 0 : index
    %c0_6 = arith.constant 0 : index
    %c0_7 = arith.constant 0 : index
    %5 = vector.load %arg5[%c0_4, %c0_5, %c0_6, %c0_7] : memref<1x1x8x8xbf16, #tpu.memory_space<vmem>>, vector<1x1x8x8xbf16>
    %6 = vector.shape_cast %5 : vector<1x1x8x8xbf16> to vector<8x8xbf16>
    %c0_8 = arith.constant 0 : index
    %c0_9 = arith.constant 0 : index
    %c0_10 = arith.constant 0 : index
    %c0_11 = arith.constant 0 : index
    %7 = vector.load %arg6[%c0_8, %c0_9, %c0_10, %c0_11] : memref<1x1x8x8xbf16, #tpu.memory_space<vmem>>, vector<1x1x8x8xbf16>
    %8 = vector.shape_cast %7 : vector<1x1x8x8xbf16> to vector<8x8xbf16>
    %cst = arith.constant dense<0.000000e+00> : vector<8x8xf32>
    %9 = tpu.matmul %4, %6, %cst {dimension_numbers = #tpu.dot_dimension_numbers<[1], [1], [0], [0], [0, 0, 1, 0], [], []>} : vector<8x8xbf16>, vector<8x8xbf16>, vector<8x8xf32> -> vector<8x8xf32>
    %c0_12 = arith.constant 0 : index
    %c0_13 = arith.constant 0 : index
    %10 = vector.load %arg8[%c0_12, %c0_13] : memref<8x1xf32, #tpu.memory_space<vmem>>, vector<8x1xf32>
    %cst_14 = arith.constant dense<0xFF800000> : vector<8xf32>
    %11 = vector.multi_reduction <maximumf>, %9, %cst_14 [1] : vector<8x8xf32> to vector<8xf32>
    %12 = vector.shape_cast %11 : vector<8xf32> to vector<8x1xf32>
    %13 = arith.maximumf %10, %12 : vector<8x1xf32>
    %14 = arith.subf %10, %13 : vector<8x1xf32>
    %15 = math.exp %14 : vector<8x1xf32>
    %16 = vector.broadcast %13 : vector<8x1xf32> to vector<8x8xf32>
    %17 = arith.subf %9, %16 : vector<8x8xf32>
    %18 = arith.truncf %17 : vector<8x8xf32> to vector<8x8xbf16>
    %19 = math.exp %18 : vector<8x8xbf16>
    %20 = arith.extf %19 : vector<8x8xbf16> to vector<8x8xf32>
    %cst_15 = arith.constant dense<0.000000e+00> : vector<8xf32>
    %21 = vector.multi_reduction <add>, %20, %cst_15 [1] : vector<8x8xf32> to vector<8xf32>
    %22 = vector.shape_cast %21 : vector<8xf32> to vector<8x1xf32>
    %c0_16 = arith.constant 0 : index
    %c0_17 = arith.constant 0 : index
    %23 = vector.load %arg9[%c0_16, %c0_17] : memref<8x1xf32, #tpu.memory_space<vmem>>, vector<8x1xf32>
    %24 = arith.mulf %15, %23 : vector<8x1xf32>
    %25 = arith.addf %24, %22 : vector<8x1xf32>
    %c0_18 = arith.constant 0 : index
    %c0_19 = arith.constant 0 : index
    %26 = vector.load %arg9[%c0_18, %c0_19] : memref<8x1xf32, #tpu.memory_space<vmem>>, vector<8x1xf32>
    tpu.vector_store %arg9[%c0_18, %c0_19], %25 {strides = array<i32>} : memref<8x1xf32, #tpu.memory_space<vmem>>, vector<8x1xf32>,
    %c0_20 = arith.constant 0 : index
    %c0_21 = arith.constant 0 : index
    %27 = vector.load %arg10[%c0_20, %c0_21] : memref<8x8xf32, #tpu.memory_space<vmem>>, vector<8x8xf32>
    %28 = vector.broadcast %15 : vector<8x1xf32> to vector<8x8xf32>
    %29 = arith.mulf %28, %27 : vector<8x8xf32>
    %cst_22 = arith.constant dense<0.000000e+00> : vector<8x8xf32>
    %30 = tpu.matmul %19, %8, %cst_22 {dimension_numbers = #tpu.dot_dimension_numbers<[1], [0], [0], [1], [0, 0, 1, 1], [], []>} : vector<8x8xbf16>, vector<8x8xbf16>, vector<8x8xf32> -> vector<8x8xf32>
    %31 = arith.addf %29, %30 : vector<8x8xf32>
    %c0_23 = arith.constant 0 : index
    %c0_24 = arith.constant 0 : index
    %32 = vector.load %arg10[%c0_23, %c0_24] : memref<8x8xf32, #tpu.memory_space<vmem>>, vector<8x8xf32>
    tpu.vector_store %arg10[%c0_23, %c0_24], %31 {strides = array<i32>} : memref<8x8xf32, #tpu.memory_space<vmem>>, vector<8x8xf32>,
    %c0_25 = arith.constant 0 : index
    %c0_26 = arith.constant 0 : index
    %33 = vector.load %arg8[%c0_25, %c0_26] : memref<8x1xf32, #tpu.memory_space<vmem>>, vector<8x1xf32>
    tpu.vector_store %arg8[%c0_25, %c0_26], %13 {strides = array<i32>} : memref<8x1xf32, #tpu.memory_space<vmem>>, vector<8x1xf32>,
    %c0_i32_27 = arith.constant 0 : i32
    %34 = arith.cmpi eq, %arg3, %c0_i32_27 : i32
    %35 = arith.extui %34 : i1 to i32
    %c0_i32_28 = arith.constant 0 : i32
    %36 = arith.cmpi ne, %35, %c0_i32_28 : i32
    scf.if %36 {
      %c0_29 = arith.constant 0 : index
      %c0_30 = arith.constant 0 : index
      %37 = vector.load %arg10[%c0_29, %c0_30] : memref<8x8xf32, #tpu.memory_space<vmem>>, vector<8x8xf32>
      %c0_31 = arith.constant 0 : index
      %c0_32 = arith.constant 0 : index
      %38 = vector.load %arg9[%c0_31, %c0_32] : memref<8x1xf32, #tpu.memory_space<vmem>>, vector<8x1xf32>
      %39 = tpu.reciprocal %38 {approx = true} : vector<8x1xf32> -> vector<8x1xf32>
      %40 = vector.broadcast %39 : vector<8x1xf32> to vector<8x8xf32>
      %41 = arith.mulf %37, %40 : vector<8x8xf32>
      %42 = arith.truncf %41 : vector<8x8xf32> to vector<8x8xbf16>
      %c0_33 = arith.constant 0 : index
      %c0_34 = arith.constant 0 : index
      %c0_35 = arith.constant 0 : index
      %c0_36 = arith.constant 0 : index
      %43 = vector.load %arg7[%c0_33, %c0_34, %c0_35, %c0_36] : memref<1x1x8x8xbf16, #tpu.memory_space<vmem>>, vector<1x1x8x8xbf16>
      %44 = vector.shape_cast %43 : vector<1x1x8x8xbf16> to vector<8x8xbf16>
      %45 = vector.shape_cast %42 : vector<8x8xbf16> to vector<1x1x8x8xbf16>
      tpu.vector_store %arg7[%c0_33, %c0_34, %c0_35, %c0_36], %45 {strides = array<i32>} : memref<1x1x8x8xbf16, #tpu.memory_space<vmem>>, vector<1x1x8x8xbf16>,
    } else {
    }
    return
  }
  func.func @transform_0(%arg0: i32, %arg1: i32, %arg2: i32, %arg3: i32) -> (i32, i32, i32, i32) {
    %c0_i32 = arith.constant 0 : i32
    %c0_i32_0 = arith.constant 0 : i32
    return %arg0, %arg1, %arg2, %c0_i32 : i32, i32, i32, i32
  }
  func.func @transform_1(%arg0: i32, %arg1: i32, %arg2: i32, %arg3: i32) -> (i32, i32, i32, i32) {
    %c0_i32 = arith.constant 0 : i32
    %c0_i32_0 = arith.constant 0 : i32
    return %arg0, %arg1, %arg3, %c0_i32 : i32, i32, i32, i32
  }
  func.func @transform_2(%arg0: i32, %arg1: i32, %arg2: i32, %arg3: i32) -> (i32, i32, i32, i32) {
    %c0_i32 = arith.constant 0 : i32
    %c0_i32_0 = arith.constant 0 : i32
    return %arg0, %arg1, %arg3, %c0_i32 : i32, i32, i32, i32
  }
  func.func @transform_3(%arg0: i32, %arg1: i32, %arg2: i32, %arg3: i32) -> (i32, i32, i32, i32) {
    %c0_i32 = arith.constant 0 : i32
    %c0_i32_0 = arith.constant 0 : i32
    return %arg0, %arg1, %arg2, %c0_i32 : i32, i32, i32, i32
  }
}

</mosaic_0001>

<llo_original>
// kernel: tpu_custom_call.1
$region0: #{tpu_custom_call.1}
  #allocation0 [shape = 'u32[]', space=smem, size = 0x4, offset = 0x4, fixed_abs, tag = 'smem constant byte address 0x4 - core index']
  #allocation1 [shape = 'u32[144,128]{1,0:T(1,128)}', space=vmem, size = 0x12000, scoped, tag = 'internal scratch']
  #allocation2 [shape = 'f32[8,1]{1,0:T(8,128)}', space=vmem, size = 0x1000, scoped, tag = 'scratch operand']
  #allocation3 [shape = 'f32[8,1]{1,0:T(8,128)}', space=vmem, size = 0x1000, scoped, tag = 'scratch operand']
  #allocation4 [shape = 'f32[8,8]{1,0:T(8,128)}', space=vmem, size = 0x1000, scoped, tag = 'scratch operand']
  %s0 = inlined_call_operand.hbm [shape: bf16[2,4,8,8], index: 0, kind: input, shape index: {}]
  %s1 = inlined_call_operand.hbm [shape: bf16[2,4,8,8], index: 1, kind: input, shape index: {}]
  %s2 = inlined_call_operand.hbm [shape: bf16[2,4,8,8], index: 2, kind: input, shape index: {}]
  %s3 = inlined_call_operand.hbm [shape: bf16[2,4,8,8], index: 3, kind: output, shape index: {}]
  %s4 = sld [smem:[#allocation0]]
  $region65: #{tpu_custom_call.1} parent=0
    _
  %s6 = ssub.s32 1, %s4
  %s7 = scalar_select 0, %s6, %s4
  $region1: #{tpu_custom_call.1} parent=0
    #allocation5 [shape = 'u8[4096]{0}', space=vmem, size = 0x1000, scoped, tag = 'input window, operand 0']
    #allocation6 [shape = 's32[2]{0}', space=sflag, size = 0x8, scoped, tag = 'scoped memory for tpu_custom_call.1']
    #allocation7 [shape = 's32[2]{0}', space=sflag, size = 0x8, scoped, tag = 'scoped memory for tpu_custom_call.1']
    #allocation8 [shape = 'u8[4096]{0}', space=vmem, size = 0x1000, scoped, tag = 'input window, operand 1']
    #allocation9 [shape = 's32[2]{0}', space=sflag, size = 0x8, scoped, tag = 'scoped memory for tpu_custom_call.1']
    #allocation10 [shape = 'u8[4096]{0}', space=vmem, size = 0x1000, scoped, tag = 'input window, operand 2']
    #allocation11 [shape = 'u8[4096]{0}', space=vmem, size = 0x1000, scoped, tag = 'output window, operand 0']
    %8 = vsyncpa [#allocation6], 0
    %s9 = scalar_lea.sflag [#allocation6], 1
    %10 = vsyncpa %s9, 0
    %11 = vsyncpa [#allocation9], 0
    %s12 = scalar_lea.sflag [#allocation9], 1
    %13 = vsyncpa %s12, 0
    %14 = vsyncpa [#allocation7], 0
    %s15 = scalar_lea.sflag [#allocation7], 1
    %16 = vsyncpa %s15, 0
    loop: start=0, step=1, limit=10
    $region2: #{tpu_custom_call.1} parent=1 // loop_pre_header
      _
    $region3: #{tpu_custom_call.1} parent=1 // loop_header
      %s18 = sphi 0, %s22
      %p19 = scmp.ge.s32.totalorder %s18, 10
      %s25 = sphi 0, %s51
      %s26 = sphi 0, %s47
      %s27 = sphi 0, %s43
      %s28 = sphi 0, %s39
      %s29 = sphi 0, %s25
      %s30 = sphi 0, %s26
      %s31 = sphi 0, %s27
      %s32 = sphi 0, %s28
      %s33 = sphi 0, %s29
      %s34 = sphi 0, %s30
      %s35 = sphi 0, %s31
      %s36 = sphi 0, %s32
      %s58 = sphi 0, %s60
      %s61 = sphi 0, %s58
      %s62 = sphi 0, %s61
      %s78 = sphi 0, %s62
      %s88 = sphi 0, %s90
      %s91 = sphi 0, %s88
      %s92 = sphi 0, %s91
      %s108 = sphi 0, %s92
      %s118 = sphi 0, %s120
      %s121 = sphi 0, %s118
      %s122 = sphi 0, %s121
      %s138 = sphi 0, %s122
      %s148 = sphi 0, %s150
      %s151 = sphi 0, %s148
      %s152 = sphi 0, %s151
      %s168 = sphi 0, %s152
    $region4: #{tpu_custom_call.1} parent=1 // loop_header_branch
      %21 = sbr.rel (%p19) target = $region8
    $region5: #{tpu_custom_call.1} parent=1 // loop_body
      %s23 = ssub.s32 %s18, 1
      %s24 = ssub.s32 %s18, 2
      %s37 = sadd.s32 1, %s28
      %p38 = scmp.ge.s32.totalorder %s37, 1
      %s39 = scalar_select %p38, 0, %s37
      %s40 = sadd.s32 1, %s27
      %s41 = scalar_select %p38, %s40, %s27
      %p42 = scmp.ge.s32.totalorder %s41, 1
      %s43 = scalar_select %p42, 0, %s41
      %s44 = sadd.s32 1, %s26
      %s45 = scalar_select %p42, %s44, %s26
      %p46 = scmp.ge.s32.totalorder %s45, 4
      %s47 = scalar_select %p46, 0, %s45
      %s48 = sadd.s32 1, %s25
      %s49 = scalar_select %p46, %s48, %s25
      %p50 = scmp.ge.s32.totalorder %s49, 2
      %s51 = scalar_select %p50, 0, %s49
      %s52 = ssub.s32 %s25, %s51
      %s53 = ssub.s32 %s26, %s47
      %s54 = sor.u32 %s52, %s53
      %s55 = ssub.s32 %s27, %s43
      %s56 = sor.u32 %s54, %s55
      %p57 = scmp.eq.s32.totalorder %s56, 0
      %s59 = sadd.s32 %s58, 1
      %s60 = scalar_select %p57, %s58, %s59
      %p63 = pneg %p57
      %p64 = scmp.eq.s32.totalorder %s18, 7
      %p65 = por %p63, %p64
      %p66 = scmp.ne.s32.totalorder %s58, %s61
      %p67 = scmp.eq.s32.totalorder %s18, 0
      %p68 = por %p66, %p67
      %p69 = scmp.ne.s32.totalorder %s58, %s61
      %p70 = scmp.eq.s32.totalorder %s23, 7
      %p71 = por %p69, %p70
      %p72 = scmp.ne.s32.totalorder %s61, %s62
      %p73 = scmp.eq.s32.totalorder %s23, 0
      %p74 = por %p72, %p73
      %p75 = scmp.ne.s32.totalorder %s61, %s62
      %p76 = scmp.eq.s32.totalorder %s24, 7
      %p77 = por %p75, %p76
      %p79 = scmp.ne.s32.totalorder %s62, %s78
      %p80 = scmp.eq.s32.totalorder %s24, 0
      %p81 = por %p79, %p80
      %s82 = ssub.s32 %s25, %s51
      %s83 = ssub.s32 %s26, %s47
      %s84 = sor.u32 %s82, %s83
      %s85 = ssub.s32 %s28, %s39
      %s86 = sor.u32 %s84, %s85
      %p87 = scmp.eq.s32.totalorder %s86, 0
      %s89 = sadd.s32 %s88, 1
      %s90 = scalar_select %p87, %s88, %s89
      %p93 = pneg %p87
      %p94 = scmp.eq.s32.totalorder %s18, 7
      %p95 = por %p93, %p94
      %p96 = scmp.ne.s32.totalorder %s88, %s91
      %p97 = scmp.eq.s32.totalorder %s18, 0
      %p98 = por %p96, %p97
      %p99 = scmp.ne.s32.totalorder %s88, %s91
      %p100 = scmp.eq.s32.totalorder %s23, 7
      %p101 = por %p99, %p100
      %p102 = scmp.ne.s32.totalorder %s91, %s92
      %p103 = scmp.eq.s32.totalorder %s23, 0
      %p104 = por %p102, %p103
      %p105 = scmp.ne.s32.totalorder %s91, %s92
      %p106 = scmp.eq.s32.totalorder %s24, 7
      %p107 = por %p105, %p106
      %p109 = scmp.ne.s32.totalorder %s92, %s108
      %p110 = scmp.eq.s32.totalorder %s24, 0
      %p111 = por %p109, %p110
      %s112 = ssub.s32 %s25, %s51
      %s113 = ssub.s32 %s26, %s47
      %s114 = sor.u32 %s112, %s113
      %s115 = ssub.s32 %s28, %s39
      %s116 = sor.u32 %s114, %s115
      %p117 = scmp.eq.s32.totalorder %s116, 0
      %s119 = sadd.s32 %s118, 1
      %s120 = scalar_select %p117, %s118, %s119
      %p123 = pneg %p117
      %p124 = scmp.eq.s32.totalorder %s18, 7
      %p125 = por %p123, %p124
      %p126 = scmp.ne.s32.totalorder %s118, %s121
      %p127 = scmp.eq.s32.totalorder %s18, 0
      %p128 = por %p126, %p127
      %p129 = scmp.ne.s32.totalorder %s118, %s121
      %p130 = scmp.eq.s32.totalorder %s23, 7
      %p131 = por %p129, %p130
      %p132 = scmp.ne.s32.totalorder %s121, %s122
      %p133 = scmp.eq.s32.totalorder %s23, 0
      %p134 = por %p132, %p133
      %p135 = scmp.ne.s32.totalorder %s121, %s122
      %p136 = scmp.eq.s32.totalorder %s24, 7
      %p137 = por %p135, %p136
      %p139 = scmp.ne.s32.totalorder %s122, %s138
      %p140 = scmp.eq.s32.totalorder %s24, 0
      %p141 = por %p139, %p140
      %s142 = ssub.s32 %s25, %s51
      %s143 = ssub.s32 %s26, %s47
      %s144 = sor.u32 %s142, %s143
      %s145 = ssub.s32 %s27, %s43
      %s146 = sor.u32 %s144, %s145
      %p147 = scmp.eq.s32.totalorder %s146, 0
      %s149 = sadd.s32 %s148, 1
      %s150 = scalar_select %p147, %s148, %s149
      %p153 = pneg %p147
      %p154 = scmp.eq.s32.totalorder %s18, 7
      %p155 = por %p153, %p154
      %p156 = scmp.ne.s32.totalorder %s148, %s151
      %p157 = scmp.eq.s32.totalorder %s18, 0
      %p158 = por %p156, %p157
      %p159 = scmp.ne.s32.totalorder %s148, %s151
      %p160 = scmp.eq.s32.totalorder %s23, 7
      %p161 = por %p159, %p160
      %p162 = scmp.ne.s32.totalorder %s151, %s152
      %p163 = scmp.eq.s32.totalorder %s23, 0
      %p164 = por %p162, %p163
      %p165 = scmp.ne.s32.totalorder %s151, %s152
      %p166 = scmp.eq.s32.totalorder %s24, 7
      %p167 = por %p165, %p166
      %p169 = scmp.ne.s32.totalorder %s152, %s168
      %p170 = scmp.eq.s32.totalorder %s24, 0
      %p171 = por %p169, %p170
      %p172 = scmp.le.s32.totalorder 1, %s18
      %p173 = scmp.lt.s32.totalorder %s18, 9
      %p174 = pnand %p172, %p173
      %p175 = pneg %p174
      // Predicated region
      $region9: #{tpu_custom_call.1} parent=5 // pred_check
        _
      $region10: #{tpu_custom_call.1} parent=5 // pred_check_branch
        %177 = sbr.rel (%p174) target = $region12
      $region11: #{tpu_custom_call.1} parent=5 // pred_region
        %s178 = ssub.s32 %s18, 1
      $region12: #{tpu_custom_call.1} parent=5 // pred_fallthru
        _
      %p179 = scmp.lt.s32.totalorder %s18, 8
      // Predicated region
      $region13: #{tpu_custom_call.1} parent=5 // pred_check
        %p180 = pneg %p179
      $region14: #{tpu_custom_call.1} parent=5 // pred_check_branch
        %182 = sbr.rel (%p180) target = $region16
      $region15: #{tpu_custom_call.1} parent=5 // pred_region
        // Predicated region
        $region17: #{tpu_custom_call.1} parent=15 // pred_check
          %p183 = pneg %p68
        $region18: #{tpu_custom_call.1} parent=15 // pred_check_branch
          %185 = sbr.rel (%p183) target = $region20
        $region19: #{tpu_custom_call.1} parent=15 // pred_region
          %s186 = sand.u32 %s58, 1
          %s187 = scalar_lea.sflag [#allocation6], %s186
          %s188 = sand.u32 %s58, 1
          %s189 = smul.addr %s188, 4
          %s190 = scalar_lea.vmem [#allocation5], %s189
          %s192 = ssub.s32 64, 64
          %193 = vsyncadd %s187, %s192
          %s194 = sadd.s32 %s27, %s26
          %s195 = smul.addr %s25, 4
          %s196 = sadd.s32 %s194, %s195
          %s197 = smul.addr %s196, 64
          %s198 = scalar_lea.hbm %s0, %s197
          %s200 = sshll.u32 %s190, 4
          %s201 = int_to_ptr.vmem [resolvable:$true] %s200
          %203 = dma.hbm_to_vmem [thread:$0]  %s198, 64, %s201, %s187
        $region20: #{tpu_custom_call.1} parent=15 // pred_fallthru
          _
        // Predicated region
        $region21: #{tpu_custom_call.1} parent=15 // pred_check
          %p204 = pneg %p98
        $region22: #{tpu_custom_call.1} parent=15 // pred_check_branch
          %206 = sbr.rel (%p204) target = $region24
        $region23: #{tpu_custom_call.1} parent=15 // pred_region
          %s207 = sand.u32 %s18, 1
          %s208 = scalar_lea.sflag [#allocation9], %s207
          %s209 = sand.u32 %s88, 1
          %s210 = smul.addr %s209, 4
          %s211 = scalar_lea.vmem [#allocation8], %s210
          %s213 = ssub.s32 64, 64
          %214 = vsyncadd %s208, %s213
          %s215 = sadd.s32 %s28, %s26
          %s216 = smul.addr %s25, 4
          %s217 = sadd.s32 %s215, %s216
          %s218 = smul.addr %s217, 64
          %s219 = scalar_lea.hbm %s1, %s218
          %s221 = sshll.u32 %s211, 4
          %s222 = int_to_ptr.vmem [resolvable:$true] %s221
          %224 = dma.hbm_to_vmem [thread:$0]  %s219, 64, %s222, %s208
        $region24: #{tpu_custom_call.1} parent=15 // pred_fallthru
          _
        // Predicated region
        $region25: #{tpu_custom_call.1} parent=15 // pred_check
          %p225 = pneg %p128
        $region26: #{tpu_custom_call.1} parent=15 // pred_check_branch
          %227 = sbr.rel (%p225) target = $region28
        $region27: #{tpu_custom_call.1} parent=15 // pred_region
          %s228 = sand.u32 %s18, 1
          %s229 = scalar_lea.sflag [#allocation9], %s228
          %s230 = sand.u32 %s118, 1
          %s231 = smul.addr %s230, 4
          %s232 = scalar_lea.vmem [#allocation10], %s231
          %s234 = ssub.s32 64, 64
          %235 = vsyncadd %s229, %s234
          %s236 = sadd.s32 %s28, %s26
          %s237 = smul.addr %s25, 4
          %s238 = sadd.s32 %s236, %s237
          %s239 = smul.addr %s238, 64
          %s240 = scalar_lea.hbm %s2, %s239
          %s242 = sshll.u32 %s232, 4
          %s243 = int_to_ptr.vmem [resolvable:$true] %s242
          %245 = dma.hbm_to_vmem [thread:$0]  %s240, 64, %s243, %s229
        $region28: #{tpu_custom_call.1} parent=15 // pred_fallthru
          _
      $region16: #{tpu_custom_call.1} parent=5 // pred_fallthru
        _
      %p246 = scmp.le.s32.totalorder 1, %s18
      %p247 = scmp.lt.s32.totalorder %s18, 9
      %p248 = pnand %p246, %p247
      %p249 = pneg %p248
      // Predicated region
      $region29: #{tpu_custom_call.1} parent=5 // pred_check
        _
      $region30: #{tpu_custom_call.1} parent=5 // pred_check_branch
        %251 = sbr.rel (%p248) target = $region32
      $region31: #{tpu_custom_call.1} parent=5 // pred_region
        %s252 = ssub.s32 %s18, 1
        %s253 = sand.u32 %s61, 1
        %s254 = scalar_lea.sflag [#allocation6], %s253
        %s255 = sand.u32 %s61, 1
        %s256 = smul.addr %s255, 4
        %s257 = scalar_lea.vmem [#allocation5], %s256
        // Predicated region
        $region33: #{tpu_custom_call.1} parent=31 // pred_check
          %p258 = pneg %p74
        $region34: #{tpu_custom_call.1} parent=31 // pred_check_branch
          %260 = sbr.rel (%p258) target = $region36
        $region35: #{tpu_custom_call.1} parent=31 // pred_region
          %261 = dma.done %s254, 64
        $region36: #{tpu_custom_call.1} parent=31 // pred_fallthru
          _
        %s262 = sand.u32 %s23, 1
        %s263 = scalar_lea.sflag [#allocation9], %s262
        %s264 = sand.u32 %s91, 1
        %s265 = smul.addr %s264, 4
        %s266 = scalar_lea.vmem [#allocation8], %s265
        // Predicated region
        $region37: #{tpu_custom_call.1} parent=31 // pred_check
          %p267 = pneg %p104
        $region38: #{tpu_custom_call.1} parent=31 // pred_check_branch
          %269 = sbr.rel (%p267) target = $region40
        $region39: #{tpu_custom_call.1} parent=31 // pred_region
          %270 = dma.done %s263, 64
        $region40: #{tpu_custom_call.1} parent=31 // pred_fallthru
          _
        %s271 = sand.u32 %s23, 1
        %s272 = scalar_lea.sflag [#allocation9], %s271
        %s273 = sand.u32 %s121, 1
        %s274 = smul.addr %s273, 4
        %s275 = scalar_lea.vmem [#allocation10], %s274
        // Predicated region
        $region41: #{tpu_custom_call.1} parent=31 // pred_check
          %p276 = pneg %p134
        $region42: #{tpu_custom_call.1} parent=31 // pred_check_branch
          %278 = sbr.rel (%p276) target = $region44
        $region43: #{tpu_custom_call.1} parent=31 // pred_region
          %279 = dma.done %s272, 64
        $region44: #{tpu_custom_call.1} parent=31 // pred_fallthru
          _
        %s280 = sand.u32 %s61, 1
        %s281 = scalar_lea.sflag [#allocation6], %s280
        %s282 = sand.u32 %s61, 1
        %s283 = smul.addr %s282, 4
        %s284 = scalar_lea.vmem [#allocation5], %s283
        %p285 = pneg %p74
        %p286 = pneg %p71
        %s287 = sand.u32 %s23, 1
        %s288 = scalar_lea.sflag [#allocation9], %s287
        %s289 = sand.u32 %s91, 1
        %s290 = smul.addr %s289, 4
        %s291 = scalar_lea.vmem [#allocation8], %s290
        %p292 = pneg %p104
        %p293 = pneg %p101
        %s294 = sand.u32 %s23, 1
        %s295 = scalar_lea.sflag [#allocation9], %s294
        %s296 = sand.u32 %s121, 1
        %s297 = smul.addr %s296, 4
        %s298 = scalar_lea.vmem [#allocation10], %s297
        %p299 = pneg %p134
        %p300 = pneg %p131
        %p301 = pneg %p164
        %p302 = pneg %p161
        %s303 = sand.u32 %s151, 1
        %s304 = scalar_lea.sflag [#allocation7], %s303
        %s305 = sand.u32 %s151, 1
        %s306 = smul.addr %s305, 4
        %s307 = scalar_lea.vmem [#allocation11], %s306
        %p309 = scmp.eq.s32.totalorder %s32, 0
        // Predicated region
        $region45: #{tpu_custom_call.1} parent=31 // pred_check
          %p310 = pneg %p309
        $region46: #{tpu_custom_call.1} parent=31 // pred_check_branch
          %312 = sbr.rel (%p310) target = $region48
        $region47: #{tpu_custom_call.1} parent=31 // pred_region
          %vm313 = vcmask 7168
          %314 = vst.msk [vmem:[#allocation2] sm:$0xff] %vm313, -inf
          %315 = vst.msk [vmem:[#allocation3] sm:$0xff] %vm313, 0.0
          %vm316 = vcmask 64512
          %317 = vst.msk [vmem:[#allocation4] sm:$0xff] %vm316, 0.0
        $region48: #{tpu_custom_call.1} parent=31 // pred_fallthru
          _
        %v318 = vld [vmem:[%s257] sm:$0xf]
        %v319 = vld [vmem:[%s266] sm:$0xf]
        %v320 = vld [vmem:[%s275] sm:$0xf]
        %vm321 = vcmask 64512
        %v323 = vsel %vm321, %v318, 0
        %v326 = vsel %vm321, %v319, 0
        %328 = vmatprep.subr.bf16.mxu0 0
        %329 = vmatpush1.bf16.xpose.msra.mxu0 0
        %330 = vmatprep.subr.bf16.mxu0 0
        %331 = vmatpush1.bf16.xpose.msra.mxu0 0
        %332 = vmatprep.subr.bf16.mxu0 0
        %333 = vmatpush1.bf16.xpose.msra.mxu0 0
        %334 = vmatprep.subr.bf16.mxu0 0
        %335 = vmatpush1.bf16.xpose.msra.mxu0 0
        %336 = vmatprep.subr.bf16.mxu0 0
        %337 = vmatpush1.bf16.xpose.msra.mxu0 0
        %338 = vmatprep.subr.bf16.mxu0 0
        %339 = vmatpush1.bf16.xpose.msra.mxu0 0
        %340 = vmatprep.subr.bf16.mxu0 0
        %341 = vmatpush1.bf16.xpose.msra.mxu0 0
        %342 = vmatprep.subr.bf16.mxu0 0
        %343 = vmatpush1.bf16.xpose.msra.mxu0 %v326
        %344 = vmatprep.subr.bf16.mxu0 0
        %345 = vmatpush2.bf16.xpose.msra.mxu0 0
        %346 = vmatprep.subr.bf16.mxu0 0
        %347 = vmatpush2.bf16.xpose.msra.mxu0 0
        %348 = vmatprep.subr.bf16.mxu0 0
        %349 = vmatpush2.bf16.xpose.msra.mxu0 0
        %350 = vmatprep.subr.bf16.mxu0 0
        %351 = vmatpush2.bf16.xpose.msra.mxu0 0
        %352 = vmatprep.subr.bf16.mxu0 0
        %353 = vmatpush2.bf16.xpose.msra.mxu0 0
        %354 = vmatprep.subr.bf16.mxu0 0
        %355 = vmatpush2.bf16.xpose.msra.mxu0 0
        %356 = vmatprep.subr.bf16.mxu0 0
        %357 = vmatpush2.bf16.xpose.msra.mxu0 0
        %358 = vmatprep.subr.bf16.mxu0 0
        %359 = vmatpush2.bf16.xpose.msra.mxu0 0
        %360 = vmatprep.mubr.bf16.mxu0 0
        %361 = vmatmul.mubr.bf16.gmra.mxu0 %v323
        %v362 = vpop.f32.mrf.mxu0
        %v363 = vadd.f32 0.0, %v362
        %v364 = vpop.f32.mrf.mxu0
        %v365 = vpop.f32.mrf.mxu0
        %v366 = vpop.f32.mrf.mxu0
        %367 = vdwg.mxu0
        %v368 = vld [vmem:[#allocation2] sm:$0xff]
        %v369 = vsel %vm321, %v363, -inf
        %370 = vmax.xlane.f32.xlu0 %v369
        %v371 = vpop.xlane.xlu0 %370
        %v372 = vmax.f32 %v368, %v371
        %v373 = vsub.f32 %v368, %v372
        %v374 = vmul.f32 %v373, 1.442695
        %v375 = vpow.pop %v374
        %377 = vset.pattern.permute.xlu0 0
        %378 = vperm.xlu0 %377, %v372
        %v379 = vpop.permute.xlu0 %378
        %v381 = vsub.f32 %v363, %v379
        %v382 = vpack.c.bf16 %v381, %v381
        %v384 = vmul.bf16 %v382, 1069105081
        %v385 = vpow.bf16.pop %v384
        %v386 = vunpack.c.l.bf16 %v385
        %v387 = vsel %vm321, %v386, 0.0
        %388 = vadd.xlane.f32.xlu0 %v387
        %v389 = vpop.xlane.xlu0 %388
        %v390 = vld [vmem:[#allocation3] sm:$0xff]
        %v391 = vmul.f32 %v375, %v390
        %v392 = vadd.f32 %v391, %v389
        %vm393 = vcmask 7168
        %394 = vst.msk [vmem:[#allocation3] sm:$0xff] %vm393, %v392
        %v395 = vld [vmem:[#allocation4] sm:$0xff]
        %397 = vset.pattern.permute.xlu0 0
        %398 = vperm.xlu0 %397, %v375
        %v399 = vpop.permute.xlu0 %398
        %v401 = vmul.f32 %v399, %v395
        %v403 = vsel %vm321, %v385, 0
        %vm405 = vcmask 1043456
        %v407 = vsel %vm405, %v320, 0
        %409 = vmatprep.subr.bf16.mxu0 0
        %410 = vmatpush1.bf16.msra.mxu0 0
        %411 = vmatprep.subr.bf16.mxu0 0
        %412 = vmatpush1.bf16.msra.mxu0 0
        %413 = vmatprep.subr.bf16.mxu0 0
        %414 = vmatpush1.bf16.msra.mxu0 0
        %415 = vmatprep.subr.bf16.mxu0 0
        %416 = vmatpush1.bf16.msra.mxu0 0
        %417 = vmatprep.subr.bf16.mxu0 0
        %418 = vmatpush1.bf16.msra.mxu0 0
        %419 = vmatprep.subr.bf16.mxu0 0
        %420 = vmatpush1.bf16.msra.mxu0 0
        %421 = vmatprep.subr.bf16.mxu0 0
        %422 = vmatpush1.bf16.msra.mxu0 0
        %423 = vmatprep.subr.bf16.mxu0 0
        %424 = vmatpush1.bf16.msra.mxu0 %v407
        %425 = vmatprep.subr.bf16.mxu0 0
        %426 = vmatpush2.bf16.msra.mxu0 0
        %427 = vmatprep.subr.bf16.mxu0 0
        %428 = vmatpush2.bf16.msra.mxu0 0
        %429 = vmatprep.subr.bf16.mxu0 0
        %430 = vmatpush2.bf16.msra.mxu0 0
        %431 = vmatprep.subr.bf16.mxu0 0
        %432 = vmatpush2.bf16.msra.mxu0 0
        %433 = vmatprep.subr.bf16.mxu0 0
        %434 = vmatpush2.bf16.msra.mxu0 0
        %435 = vmatprep.subr.bf16.mxu0 0
        %436 = vmatpush2.bf16.msra.mxu0 0
        %437 = vmatprep.subr.bf16.mxu0 0
        %438 = vmatpush2.bf16.msra.mxu0 0
        %439 = vmatprep.subr.bf16.mxu0 0
        %440 = vmatpush2.bf16.msra.mxu0 0
        %441 = vmatprep.mubr.bf16.mxu0 0
        %442 = vmatmul.mubr.bf16.gmra.mxu0 %v403
        %v443 = vpop.f32.mrf.mxu0
        %v444 = vadd.f32 0.0, %v443
        %v445 = vpop.f32.mrf.mxu0
        %v446 = vpop.f32.mrf.mxu0
        %v447 = vpop.f32.mrf.mxu0
        %448 = vdwg.mxu0
        %v449 = vadd.f32 %v401, %v444
        %450 = vst.msk [vmem:[#allocation4] sm:$0xff] %vm321, %v449
        %451 = vst.msk [vmem:[#allocation2] sm:$0xff] %vm393, %v372
        // Predicated region
        $region49: #{tpu_custom_call.1} parent=31 // pred_check
          %p452 = pneg %p309
        $region50: #{tpu_custom_call.1} parent=31 // pred_check_branch
          %454 = sbr.rel (%p452) target = $region52
        $region51: #{tpu_custom_call.1} parent=31 // pred_region
          %v455 = vld [vmem:[#allocation4] sm:$0xff]
          %v456 = vld [vmem:[#allocation3] sm:$0xff]
          %v457 = vrcp.pop %v456
          %459 = vset.pattern.permute.xlu0 0
          %460 = vperm.xlu0 %459, %v457
          %v461 = vpop.permute.xlu0 %460
          %v463 = vmul.f32 %v455, %v461
          %v464 = vpack.c.bf16 %v463, %v463
          %vm465 = vcmask 60416
          %466 = vst.msk [vmem:[%s307] sm:$0xf] %vm465, %v464
        $region52: #{tpu_custom_call.1} parent=31 // pred_fallthru
          _
        %s467 = sand.u32 %s151, 1
        %s468 = scalar_lea.sflag [#allocation7], %s467
        %s469 = sand.u32 %s151, 1
        %s470 = smul.addr %s469, 4
        %s471 = scalar_lea.vmem [#allocation11], %s470
        // Predicated region
        $region53: #{tpu_custom_call.1} parent=31 // pred_check
          %p472 = pneg %p161
        $region54: #{tpu_custom_call.1} parent=31 // pred_check_branch
          %474 = sbr.rel (%p472) target = $region56
        $region55: #{tpu_custom_call.1} parent=31 // pred_region
          %s476 = ssub.s32 64, 64
          %477 = vsyncadd %s468, %s476
          %s478 = sadd.s32 %s31, %s30
          %s479 = smul.addr %s29, 4
          %s480 = sadd.s32 %s478, %s479
          %s481 = smul.addr %s480, 64
          %s482 = scalar_lea.hbm %s3, %s481
          %s484 = sshll.u32 %s471, 4
          %s485 = int_to_ptr.vmem [resolvable:$true] %s484
          %487 = dma.vmem_to_hbm [thread:$0]  %s485, 64, %s482, %s468
        $region56: #{tpu_custom_call.1} parent=31 // pred_fallthru
          _
      $region32: #{tpu_custom_call.1} parent=5 // pred_fallthru
        _
      %p488 = scmp.le.s32.totalorder 2, %s18
      // Predicated region
      $region57: #{tpu_custom_call.1} parent=5 // pred_check
        %p489 = pneg %p488
      $region58: #{tpu_custom_call.1} parent=5 // pred_check_branch
        %491 = sbr.rel (%p489) target = $region60
      $region59: #{tpu_custom_call.1} parent=5 // pred_region
        %s492 = ssub.s32 %s18, 2
        // Predicated region
        $region61: #{tpu_custom_call.1} parent=59 // pred_check
          %p493 = pneg %p167
        $region62: #{tpu_custom_call.1} parent=59 // pred_check_branch
          %495 = sbr.rel (%p493) target = $region64
        $region63: #{tpu_custom_call.1} parent=59 // pred_region
          %s496 = sand.u32 %s152, 1
          %s497 = scalar_lea.sflag [#allocation7], %s496
          %s498 = sand.u32 %s152, 1
          %s499 = smul.addr %s498, 4
          %s500 = scalar_lea.vmem [#allocation11], %s499
          %501 = dma.done %s497, 64
        $region64: #{tpu_custom_call.1} parent=59 // pred_fallthru
          _
      $region60: #{tpu_custom_call.1} parent=5 // pred_fallthru
        _
    $region6: #{tpu_custom_call.1} parent=1 // loop_footer
      %s22 = sadd.s32 1, %s18
    $region7: #{tpu_custom_call.1} parent=1 // loop_footer_branch
      %17 = sbr.rel target = $region3
    $region8: #{tpu_custom_call.1} parent=1 // loop_exit
      _
    %502 = vsyncpa [#allocation6], 1
    %s503 = scalar_lea.sflag [#allocation6], 1
    %504 = vsyncpa %s503, 1
    %505 = vsyncpa [#allocation9], 1
    %s506 = scalar_lea.sflag [#allocation9], 1
    %507 = vsyncpa %s506, 1
    %508 = vsyncpa [#allocation7], 1
    %s509 = scalar_lea.sflag [#allocation7], 1
    %510 = vsyncpa %s509, 1

</llo_original>
